<compile_context>
chip_gen: v5e
topology: v5e:2x2
jax: 0.10.0
libtpu: 0.0.40
codegen_flags: <defaults>
</compile_context>

<pallas_src>
import math
import functools

import jax
import jax.numpy as jnp
from jax.experimental import pallas as pl
from jax.experimental.pallas import tpu as pltpu


def encoder_layer_kernel(x_ref, bias_ref,
                         wqkv_ref, bqkv_ref, wo_ref, bo_ref,
                         w1_ref, b1_ref, w2_ref, b2_ref,
                         o_ref, *, num_heads, d_k):
    # One grid step == one batch element. Everything stays in VMEM.
    D = num_heads * d_k
    x = x_ref[0]                 # (S, D)  fp32 (kept fp32 for the residuals)
    att_bias = bias_ref[0]       # (S, S)  fp32 additive mask bias (0 or -1e9)

    x_bf = x.astype(jnp.bfloat16)

    # Fused QKV projection: one (S, D) x (D, 3D) MXU matmul, fp32 accumulate.
    qkv = jnp.dot(x_bf, wqkv_ref[...],
                  preferred_element_type=jnp.float32) + bqkv_ref[...]   # (S, 3D)

    scale = 1.0 / math.sqrt(d_k)
    q = qkv[:, 0:D] * scale          # fold the 1/sqrt(d_k) into q (fp32)
    k = qkv[:, D:2 * D]
    v = qkv[:, 2 * D:3 * D]

    # Heads-leading layout (H, S, d_k); cast to bf16 for the batched MXU matmuls.
    def split_heads(t):
        return jnp.stack(
            [t[:, h * d_k:(h + 1) * d_k] for h in range(num_heads)],
            axis=0).astype(jnp.bfloat16)

    qh = split_heads(q)              # (H, S, d_k) bf16
    kh = split_heads(k)              # (H, S, d_k) bf16
    vh = split_heads(v)              # (H, S, d_k) bf16

    # Batched scores: contracts d_k directly (no explicit kh.T), fp32 accumulate.
    scores = jnp.einsum('hqd,hkd->hqk', qh, kh,
                        preferred_element_type=jnp.float32)              # (H, S, S)
    scores = scores + att_bias       # broadcast (S, S) bias over heads

    # Numerically stable softmax (fp32); reciprocal goes to the EUP slot.
    m = jnp.max(scores, axis=-1, keepdims=True)
    e = jnp.exp(scores - m)
    p = e * pl.reciprocal(jnp.sum(e, axis=-1, keepdims=True), approx=True)

    # Batched context: (H, S, S) x (H, S, d_k) -> (H, S, d_k), fp32 accumulate.
    ctx = jnp.einsum('hqk,hkd->hqd', p.astype(jnp.bfloat16), vh,
                     preferred_element_type=jnp.float32)

    # Merge heads back to (S, D) and apply the output projection.
    merged = jnp.concatenate([ctx[h] for h in range(num_heads)], axis=-1)
    attn = jnp.dot(merged.astype(jnp.bfloat16), wo_ref[...],
                   preferred_element_type=jnp.float32) + bo_ref[...]

    # Residual 1 (fp32).
    x1 = x + attn

    # FeedForward: relu(x1 @ W1 + b1) @ W2 + b2 (bf16 operands, fp32 accumulate).
    h1 = jnp.dot(x1.astype(jnp.bfloat16), w1_ref[...],
                 preferred_element_type=jnp.float32) + b1_ref[...]
    h1 = jnp.maximum(h1, 0.0)
    ff = jnp.dot(h1.astype(jnp.bfloat16), w2_ref[...],
                 preferred_element_type=jnp.float32) + b2_ref[...]

    # Residual 2.
    o_ref[0] = (x1 + ff).astype(o_ref.dtype)


def _nbytes(shape, dtype):
    n = 1
    for s in shape:
        n *= s
    return n * jnp.dtype(dtype).itemsize


def encoder_layer(x, mask, params, *, num_heads):
    B, S, D = x.shape
    d_k = D // num_heads
    (wq, bq, wk, bk, wv, bv, wo, bo, w1, b1, w2, b2) = params
    dff = w1.shape[1]

    # --- wrapper-side parameter prep (one-time, outside the kernel) ---
    # Fused QKV weight/bias; weights cast to bf16 for MXU + DMA savings,
    # biases stay fp32 (added to fp32 accumulators).
    wqkv = jnp.concatenate([wq, wk, wv], axis=1).astype(jnp.bfloat16)   # (D, 3D)
    bqkv = jnp.concatenate([bq, bk, bv], axis=1).astype(jnp.float32)    # (1, 3D)
    wo_b = wo.astype(jnp.bfloat16)
    w1_b = w1.astype(jnp.bfloat16)
    w2_b = w2.astype(jnp.bfloat16)

    # Additive attention bias: 0 where visible, -1e9 where masked.
    att_bias = jnp.where(mask == 0.0, -1000000000.0, 0.0).astype(jnp.float32)

    # --- VMEM budget (bytes) with headroom; raise the default scoped limit ---
    est = 0
    # streamed per-batch blocks (double-buffered by the pipeline): x, out, bias
    est += 2 * (2 * _nbytes((1, S, D), jnp.float32) + _nbytes((1, S, S), jnp.float32))
    # weights (bf16) + biases (fp32); pipeline still allocates 2 buffers each
    est += 2 * (_nbytes((D, 3 * D), jnp.bfloat16) + _nbytes((D, D), jnp.bfloat16)
                + _nbytes((D, dff), jnp.bfloat16) + _nbytes((dff, D), jnp.bfloat16))
    est += 2 * (_nbytes((1, 3 * D), jnp.float32) + 2 * _nbytes((1, D), jnp.float32)
                + _nbytes((1, dff), jnp.float32))
    # in-kernel fp32 temporaries: qkv, q/k/v heads, scores+probs, ctx, x1, h1, ff
    est += 4 * (3 * S * D + 3 * S * D + 2 * num_heads * S * S
                + S * D + S * D + S * dff + S * D)
    vmem_limit = int(min(max(2 * est, 32 * 2 ** 20), 100 * 2 ** 20))

    weight_spec = lambda shape: pl.BlockSpec(shape, lambda b: (0, 0))
    kernel = functools.partial(encoder_layer_kernel,
                               num_heads=num_heads, d_k=d_k)

    return pl.pallas_call(
        kernel,
        out_shape=jax.ShapeDtypeStruct((B, S, D), jnp.float32),
        grid_spec=pltpu.PrefetchScalarGridSpec(
            num_scalar_prefetch=0,
            grid=(B,),
            in_specs=[
                pl.BlockSpec((1, S, D), lambda b: (b, 0, 0)),    # x
                pl.BlockSpec((1, S, S), lambda b: (b, 0, 0)),    # additive mask bias
                weight_spec((D, 3 * D)), weight_spec((1, 3 * D)),  # Wqkv, bqkv
                weight_spec((D, D)),     weight_spec((1, D)),      # Wo, bo
                weight_spec((D, dff)),   weight_spec((1, dff)),    # W1, b1
                weight_spec((dff, D)),   weight_spec((1, D)),      # W2, b2
            ],
            out_specs=pl.BlockSpec((1, S, D), lambda b: (b, 0, 0)),
        ),
        compiler_params=pltpu.CompilerParams(
            dimension_semantics=("parallel",),
            vmem_limit_bytes=vmem_limit),
    )(x, att_bias, wqkv, bqkv, wo_b, bo, w1_b, b1, w2_b, b2)


def init_params(key, d_model, dff):
    ks = jax.random.split(key, 12)
    s = 0.02
    wq = s * jax.random.normal(ks[0], (d_model, d_model), jnp.float32)
    bq = s * jax.random.normal(ks[1], (1, d_model), jnp.float32)
    wk = s * jax.random.normal(ks[2], (d_model, d_model), jnp.float32)
    bk = s * jax.random.normal(ks[3], (1, d_model), jnp.float32)
    wv = s * jax.random.normal(ks[4], (d_model, d_model), jnp.float32)
    bv = s * jax.random.normal(ks[5], (1, d_model), jnp.float32)
    wo = s * jax.random.normal(ks[6], (d_model, d_model), jnp.float32)
    bo = s * jax.random.normal(ks[7], (1, d_model), jnp.float32)
    w1 = s * jax.random.normal(ks[8], (d_model, dff), jnp.float32)
    b1 = s * jax.random.normal(ks[9], (1, dff), jnp.float32)
    w2 = s * jax.random.normal(ks[10], (dff, d_model), jnp.float32)
    b2 = s * jax.random.normal(ks[11], (1, d_model), jnp.float32)
    return (wq, bq, wk, bk, wv, bv, wo, bo, w1, b1, w2, b2)


def encoder_layer_ref(x, mask, params, *, num_heads):
    """Pure-JAX fp32 reference (mirrors the PyTorch forward, eval mode)."""
    (wq, bq, wk, bk, wv, bv, wo, bo, w1, b1, w2, b2) = params
    B, S, D = x.shape
    d_k = D // num_heads

    def proj(x, w, b):
        return x @ w + b[0]

    q = proj(x, wq, bq).reshape(B, S, num_heads, d_k).transpose(0, 2, 1, 3)
    k = proj(x, wk, bk).reshape(B, S, num_heads, d_k).transpose(0, 2, 1, 3)
    v = proj(x, wv, bv).reshape(B, S, num_heads, d_k).transpose(0, 2, 1, 3)
    scores = jnp.einsum("bhqd,bhkd->bhqk", q, k) / math.sqrt(d_k)
    scores = jnp.where(mask[:, None, :, :] == 0.0, -1000000000.0, scores)
    p = jax.nn.softmax(scores, axis=-1)
    o = jnp.einsum("bhqk,bhkd->bhqd", p, v).transpose(0, 2, 1, 3).reshape(B, S, D)
    attn = proj(o, wo, bo)
    x1 = x + attn
    ff = proj(jax.nn.relu(proj(x1, w1, b1)), w2, b2)
    return x1 + ff


if __name__ == "__main__":
    B, S, D = 2, 8, 32
    NUM_HEADS = 4
    DFF = 64

    key = jax.random.PRNGKey(0)
    kx, km, kp = jax.random.split(key, 3)
    x = jax.random.normal(kx, (B, S, D), jnp.float32)
    # mask: 1 = attend, 0 = masked (some positions masked deterministically)
    mask = (jax.random.uniform(km, (B, S, S)) > 0.2).astype(jnp.float32)
    # ensure every row has at least one visible position (diagonal visible)
    mask = jnp.maximum(mask, jnp.eye(S, dtype=jnp.float32)[None, :, :])

    params = init_params(kp, D, DFF)

    out = encoder_layer(x, mask, params, num_heads=NUM_HEADS)
    out = jax.block_until_ready(out)

    ref = encoder_layer_ref(x, mask, params, num_heads=NUM_HEADS)
    assert out.shape == (B, S, D)
    # bf16 matmul operands (fp32 accumulation) => looser tolerance than pure fp32.
    assert jnp.allclose(out, ref, atol=2e-2, rtol=2e-2), "mismatch vs. JAX reference"

    print("KERNEL_OK")
</pallas_src>

<mosaic_0001>
module attributes {stable_mosaic.version = 11 : i64} {
  func.func @encoder_layer_kernel(%arg0: i32, %arg1: memref<1x8x32xf32, #tpu.memory_space<vmem>>, %arg2: memref<1x8x8xf32, #tpu.memory_space<vmem>>, %arg3: memref<32x96xbf16, #tpu.memory_space<vmem>>, %arg4: memref<1x96xf32, #tpu.memory_space<vmem>>, %arg5: memref<32x32xbf16, #tpu.memory_space<vmem>>, %arg6: memref<1x32xf32, #tpu.memory_space<vmem>>, %arg7: memref<32x64xbf16, #tpu.memory_space<vmem>>, %arg8: memref<1x64xf32, #tpu.memory_space<vmem>>, %arg9: memref<64x32xbf16, #tpu.memory_space<vmem>>, %arg10: memref<1x32xf32, #tpu.memory_space<vmem>>, %arg11: memref<1x8x32xf32, #tpu.memory_space<vmem>>) attributes {dimension_semantics = [#tpu.dimension_semantics<parallel>], iteration_bounds = array<i64: 2>, scalar_prefetch = 0 : i64, scratch_operands = 0 : i64, tpu.core_type = #tpu.core_type<tc>, window_params = [{transform_indices = @transform_0, window_bounds = array<i64: 1, 8, 32>}, {transform_indices = @transform_1, window_bounds = array<i64: 1, 8, 8>}, {pipeline_mode = #tpu.pipeline_mode<synchronous>, transform_indices = @transform_2, window_bounds = array<i64: 32, 96>}, {pipeline_mode = #tpu.pipeline_mode<synchronous>, transform_indices = @transform_3, window_bounds = array<i64: 1, 96>}, {pipeline_mode = #tpu.pipeline_mode<synchronous>, transform_indices = @transform_4, window_bounds = array<i64: 32, 32>}, {pipeline_mode = #tpu.pipeline_mode<synchronous>, transform_indices = @transform_5, window_bounds = array<i64: 1, 32>}, {pipeline_mode = #tpu.pipeline_mode<synchronous>, transform_indices = @transform_6, window_bounds = array<i64: 32, 64>}, {pipeline_mode = #tpu.pipeline_mode<synchronous>, transform_indices = @transform_7, window_bounds = array<i64: 1, 64>}, {pipeline_mode = #tpu.pipeline_mode<synchronous>, transform_indices = @transform_8, window_bounds = array<i64: 64, 32>}, {pipeline_mode = #tpu.pipeline_mode<synchronous>, transform_indices = @transform_9, window_bounds = array<i64: 1, 32>}, {transform_indices = @transform_10, window_bounds = array<i64: 1, 8, 32>}]} {
    %c0 = arith.constant 0 : index
    %c0_0 = arith.constant 0 : index
    %c0_1 = arith.constant 0 : index
    %0 = vector.load %arg1[%c0, %c0_0, %c0_1] : memref<1x8x32xf32, #tpu.memory_space<vmem>>, vector<1x8x32xf32>
    %1 = vector.shape_cast %0 : vector<1x8x32xf32> to vector<8x32xf32>
    %c0_2 = arith.constant 0 : index
    %c0_3 = arith.constant 0 : index
    %c0_4 = arith.constant 0 : index
    %2 = vector.load %arg2[%c0_2, %c0_3, %c0_4] : memref<1x8x8xf32, #tpu.memory_space<vmem>>, vector<1x8x8xf32>
    %3 = vector.shape_cast %2 : vector<1x8x8xf32> to vector<8x8xf32>
    %4 = arith.truncf %1 : vector<8x32xf32> to vector<8x32xbf16>
    %c0_5 = arith.constant 0 : index
    %c0_6 = arith.constant 0 : index
    %5 = vector.load %arg3[%c0_5, %c0_6] : memref<32x96xbf16, #tpu.memory_space<vmem>>, vector<32x96xbf16>
    %cst = arith.constant dense<0.000000e+00> : vector<8x96xf32>
    %6 = tpu.matmul %4, %5, %cst {dimension_numbers = #tpu.dot_dimension_numbers<[1], [0], [0], [1], [0, 0, 1, 1], [], []>} : vector<8x32xbf16>, vector<32x96xbf16>, vector<8x96xf32> -> vector<8x96xf32>
    %c0_7 = arith.constant 0 : index
    %c0_8 = arith.constant 0 : index
    %7 = vector.load %arg4[%c0_7, %c0_8] : memref<1x96xf32, #tpu.memory_space<vmem>>, vector<1x96xf32>
    %8 = vector.broadcast %7 : vector<1x96xf32> to vector<8x96xf32>
    %9 = arith.addf %6, %8 : vector<8x96xf32>
    %10 = vector.extract_strided_slice %9 {offsets = [0, 0], sizes = [8, 32], strides = [1, 1]} : vector<8x96xf32> to vector<8x32xf32>
    %cst_9 = arith.constant 0.353553385 : f32
    %11 = vector.broadcast %cst_9 : f32 to vector<8x32xf32>
    %12 = arith.mulf %10, %11 : vector<8x32xf32>
    %13 = vector.extract_strided_slice %9 {offsets = [0, 32], sizes = [8, 32], strides = [1, 1]} : vector<8x96xf32> to vector<8x32xf32>
    %14 = vector.extract_strided_slice %9 {offsets = [0, 64], sizes = [8, 32], strides = [1, 1]} : vector<8x96xf32> to vector<8x32xf32>
    %15 = vector.extract_strided_slice %12 {offsets = [0, 0], sizes = [8, 8], strides = [1, 1]} : vector<8x32xf32> to vector<8x8xf32>
    %16 = vector.extract_strided_slice %12 {offsets = [0, 8], sizes = [8, 8], strides = [1, 1]} : vector<8x32xf32> to vector<8x8xf32>
    %17 = vector.extract_strided_slice %12 {offsets = [0, 16], sizes = [8, 8], strides = [1, 1]} : vector<8x32xf32> to vector<8x8xf32>
    %18 = vector.extract_strided_slice %12 {offsets = [0, 24], sizes = [8, 8], strides = [1, 1]} : vector<8x32xf32> to vector<8x8xf32>
    %19 = vector.shape_cast %15 : vector<8x8xf32> to vector<1x8x8xf32>
    %20 = vector.shape_cast %16 : vector<8x8xf32> to vector<1x8x8xf32>
    %21 = vector.shape_cast %17 : vector<8x8xf32> to vector<1x8x8xf32>
    %22 = vector.shape_cast %18 : vector<8x8xf32> to vector<1x8x8xf32>
    %23 = tpu.concatenate %19, %20, %21, %22 in 0 : vector<1x8x8xf32>, vector<1x8x8xf32>, vector<1x8x8xf32>, vector<1x8x8xf32> -> vector<4x8x8xf32>
    %24 = arith.truncf %23 : vector<4x8x8xf32> to vector<4x8x8xbf16>
    %25 = vector.extract_strided_slice %13 {offsets = [0, 0], sizes = [8, 8], strides = [1, 1]} : vector<8x32xf32> to vector<8x8xf32>
    %26 = vector.extract_strided_slice %13 {offsets = [0, 8], sizes = [8, 8], strides = [1, 1]} : vector<8x32xf32> to vector<8x8xf32>
    %27 = vector.extract_strided_slice %13 {offsets = [0, 16], sizes = [8, 8], strides = [1, 1]} : vector<8x32xf32> to vector<8x8xf32>
    %28 = vector.extract_strided_slice %13 {offsets = [0, 24], sizes = [8, 8], strides = [1, 1]} : vector<8x32xf32> to vector<8x8xf32>
    %29 = vector.shape_cast %25 : vector<8x8xf32> to vector<1x8x8xf32>
    %30 = vector.shape_cast %26 : vector<8x8xf32> to vector<1x8x8xf32>
    %31 = vector.shape_cast %27 : vector<8x8xf32> to vector<1x8x8xf32>
    %32 = vector.shape_cast %28 : vector<8x8xf32> to vector<1x8x8xf32>
    %33 = tpu.concatenate %29, %30, %31, %32 in 0 : vector<1x8x8xf32>, vector<1x8x8xf32>, vector<1x8x8xf32>, vector<1x8x8xf32> -> vector<4x8x8xf32>
    %34 = arith.truncf %33 : vector<4x8x8xf32> to vector<4x8x8xbf16>
    %35 = vector.extract_strided_slice %14 {offsets = [0, 0], sizes = [8, 8], strides = [1, 1]} : vector<8x32xf32> to vector<8x8xf32>
    %36 = vector.extract_strided_slice %14 {offsets = [0, 8], sizes = [8, 8], strides = [1, 1]} : vector<8x32xf32> to vector<8x8xf32>
    %37 = vector.extract_strided_slice %14 {offsets = [0, 16], sizes = [8, 8], strides = [1, 1]} : vector<8x32xf32> to vector<8x8xf32>
    %38 = vector.extract_strided_slice %14 {offsets = [0, 24], sizes = [8, 8], strides = [1, 1]} : vector<8x32xf32> to vector<8x8xf32>
    %39 = vector.shape_cast %35 : vector<8x8xf32> to vector<1x8x8xf32>
    %40 = vector.shape_cast %36 : vector<8x8xf32> to vector<1x8x8xf32>
    %41 = vector.shape_cast %37 : vector<8x8xf32> to vector<1x8x8xf32>
    %42 = vector.shape_cast %38 : vector<8x8xf32> to vector<1x8x8xf32>
    %43 = tpu.concatenate %39, %40, %41, %42 in 0 : vector<1x8x8xf32>, vector<1x8x8xf32>, vector<1x8x8xf32>, vector<1x8x8xf32> -> vector<4x8x8xf32>
    %44 = arith.truncf %43 : vector<4x8x8xf32> to vector<4x8x8xbf16>
    "tpu.trace_start"() <{level = 10 : i32, message = "hqd,hkd->hqk"}> : () -> ()
    %cst_10 = arith.constant dense<0.000000e+00> : vector<4x8x8xf32>
    %45 = tpu.matmul %24, %34, %cst_10 {dimension_numbers = #tpu.dot_dimension_numbers<[2], [2], [1], [1], [0, 0, 0, 1, 1, 1], [0], [0]>} : vector<4x8x8xbf16>, vector<4x8x8xbf16>, vector<4x8x8xf32> -> vector<4x8x8xf32>
    "tpu.trace_stop"() : () -> ()
    %46 = vector.shape_cast %3 : vector<8x8xf32> to vector<1x8x8xf32>
    %47 = vector.broadcast %46 : vector<1x8x8xf32> to vector<4x8x8xf32>
    %48 = arith.addf %45, %47 : vector<4x8x8xf32>
    %cst_11 = arith.constant dense<0xFF800000> : vector<4x8xf32>
    %49 = vector.multi_reduction <maximumf>, %48, %cst_11 [2] : vector<4x8x8xf32> to vector<4x8xf32>
    %50 = vector.shape_cast %49 : vector<4x8xf32> to vector<4x8x1xf32>
    %51 = vector.broadcast %50 : vector<4x8x1xf32> to vector<4x8x8xf32>
    %52 = arith.subf %48, %51 : vector<4x8x8xf32>
    %53 = math.exp %52 : vector<4x8x8xf32>
    %cst_12 = arith.constant dense<0.000000e+00> : vector<4x8xf32>
    %54 = vector.multi_reduction <add>, %53, %cst_12 [2] : vector<4x8x8xf32> to vector<4x8xf32>
    %55 = vector.shape_cast %54 : vector<4x8xf32> to vector<4x8x1xf32>
    %56 = tpu.reciprocal %55 {approx = true} : vector<4x8x1xf32> -> vector<4x8x1xf32>
    %57 = vector.broadcast %56 : vector<4x8x1xf32> to vector<4x8x8xf32>
    %58 = arith.mulf %53, %57 : vector<4x8x8xf32>
    %59 = arith.truncf %58 : vector<4x8x8xf32> to vector<4x8x8xbf16>
    "tpu.trace_start"() <{level = 10 : i32, message = "hqk,hkd->hqd"}> : () -> ()
    %cst_13 = arith.constant dense<0.000000e+00> : vector<4x8x8xf32>
    %60 = tpu.matmul %59, %44, %cst_13 {dimension_numbers = #tpu.dot_dimension_numbers<[2], [1], [1], [2], [0, 0, 0, 1, 1, 2], [0], [0]>} : vector<4x8x8xbf16>, vector<4x8x8xbf16>, vector<4x8x8xf32> -> vector<4x8x8xf32>
    "tpu.trace_stop"() : () -> ()
    %61 = vector.extract_strided_slice %60 {offsets = [0, 0, 0], sizes = [1, 8, 8], strides = [1, 1, 1]} : vector<4x8x8xf32> to vector<1x8x8xf32>
    %62 = vector.shape_cast %61 : vector<1x8x8xf32> to vector<8x8xf32>
    %63 = vector.extract_strided_slice %60 {offsets = [1, 0, 0], sizes = [1, 8, 8], strides = [1, 1, 1]} : vector<4x8x8xf32> to vector<1x8x8xf32>
    %64 = vector.shape_cast %63 : vector<1x8x8xf32> to vector<8x8xf32>
    %65 = vector.extract_strided_slice %60 {offsets = [2, 0, 0], sizes = [1, 8, 8], strides = [1, 1, 1]} : vector<4x8x8xf32> to vector<1x8x8xf32>
    %66 = vector.shape_cast %65 : vector<1x8x8xf32> to vector<8x8xf32>
    %67 = vector.extract_strided_slice %60 {offsets = [3, 0, 0], sizes = [1, 8, 8], strides = [1, 1, 1]} : vector<4x8x8xf32> to vector<1x8x8xf32>
    %68 = vector.shape_cast %67 : vector<1x8x8xf32> to vector<8x8xf32>
    %69 = tpu.concatenate %62, %64, %66, %68 in 1 : vector<8x8xf32>, vector<8x8xf32>, vector<8x8xf32>, vector<8x8xf32> -> vector<8x32xf32>
    %70 = arith.truncf %69 : vector<8x32xf32> to vector<8x32xbf16>
    %c0_14 = arith.constant 0 : index
    %c0_15 = arith.constant 0 : index
    %71 = vector.load %arg5[%c0_14, %c0_15] : memref<32x32xbf16, #tpu.memory_space<vmem>>, vector<32x32xbf16>
    %cst_16 = arith.constant dense<0.000000e+00> : vector<8x32xf32>
    %72 = tpu.matmul %70, %71, %cst_16 {dimension_numbers = #tpu.dot_dimension_numbers<[1], [0], [0], [1], [0, 0, 1, 1], [], []>} : vector<8x32xbf16>, vector<32x32xbf16>, vector<8x32xf32> -> vector<8x32xf32>
    %c0_17 = arith.constant 0 : index
    %c0_18 = arith.constant 0 : index
    %73 = vector.load %arg6[%c0_17, %c0_18] : memref<1x32xf32, #tpu.memory_space<vmem>>, vector<1x32xf32>
    %74 = vector.broadcast %73 : vector<1x32xf32> to vector<8x32xf32>
    %75 = arith.addf %72, %74 : vector<8x32xf32>
    %76 = arith.addf %1, %75 : vector<8x32xf32>
    %77 = arith.truncf %76 : vector<8x32xf32> to vector<8x32xbf16>
    %c0_19 = arith.constant 0 : index
    %c0_20 = arith.constant 0 : index
    %78 = vector.load %arg7[%c0_19, %c0_20] : memref<32x64xbf16, #tpu.memory_space<vmem>>, vector<32x64xbf16>
    %cst_21 = arith.constant dense<0.000000e+00> : vector<8x64xf32>
    %79 = tpu.matmul %77, %78, %cst_21 {dimension_numbers = #tpu.dot_dimension_numbers<[1], [0], [0], [1], [0, 0, 1, 1], [], []>} : vector<8x32xbf16>, vector<32x64xbf16>, vector<8x64xf32> -> vector<8x64xf32>
    %c0_22 = arith.constant 0 : index
    %c0_23 = arith.constant 0 : index
    %80 = vector.load %arg8[%c0_22, %c0_23] : memref<1x64xf32, #tpu.memory_space<vmem>>, vector<1x64xf32>
    %81 = vector.broadcast %80 : vector<1x64xf32> to vector<8x64xf32>
    %82 = arith.addf %79, %81 : vector<8x64xf32>
    %cst_24 = arith.constant 0.000000e+00 : f32
    %83 = vector.broadcast %cst_24 : f32 to vector<8x64xf32>
    %84 = arith.maximumf %82, %83 : vector<8x64xf32>
    %85 = arith.truncf %84 : vector<8x64xf32> to vector<8x64xbf16>
    %c0_25 = arith.constant 0 : index
    %c0_26 = arith.constant 0 : index
    %86 = vector.load %arg9[%c0_25, %c0_26] : memref<64x32xbf16, #tpu.memory_space<vmem>>, vector<64x32xbf16>
    %cst_27 = arith.constant dense<0.000000e+00> : vector<8x32xf32>
    %87 = tpu.matmul %85, %86, %cst_27 {dimension_numbers = #tpu.dot_dimension_numbers<[1], [0], [0], [1], [0, 0, 1, 1], [], []>} : vector<8x64xbf16>, vector<64x32xbf16>, vector<8x32xf32> -> vector<8x32xf32>
    %c0_28 = arith.constant 0 : index
    %c0_29 = arith.constant 0 : index
    %88 = vector.load %arg10[%c0_28, %c0_29] : memref<1x32xf32, #tpu.memory_space<vmem>>, vector<1x32xf32>
    %89 = vector.broadcast %88 : vector<1x32xf32> to vector<8x32xf32>
    %90 = arith.addf %87, %89 : vector<8x32xf32>
    %91 = arith.addf %76, %90 : vector<8x32xf32>
    %c0_30 = arith.constant 0 : index
    %c0_31 = arith.constant 0 : index
    %c0_32 = arith.constant 0 : index
    %92 = vector.load %arg11[%c0_30, %c0_31, %c0_32] : memref<1x8x32xf32, #tpu.memory_space<vmem>>, vector<1x8x32xf32>
    %93 = vector.shape_cast %92 : vector<1x8x32xf32> to vector<8x32xf32>
    %94 = vector.shape_cast %91 : vector<8x32xf32> to vector<1x8x32xf32>
    tpu.vector_store %arg11[%c0_30, %c0_31, %c0_32], %94 {strides = array<i32>} : memref<1x8x32xf32, #tpu.memory_space<vmem>>, vector<1x8x32xf32>,
    return
  }
  func.func @transform_0(%arg0: i32) -> (i32, i32, i32) {
    %c0_i32 = arith.constant 0 : i32
    %c0_i32_0 = arith.constant 0 : i32
    %c0_i32_1 = arith.constant 0 : i32
    return %arg0, %c0_i32, %c0_i32_0 : i32, i32, i32
  }
  func.func @transform_1(%arg0: i32) -> (i32, i32, i32) {
    %c0_i32 = arith.constant 0 : i32
    %c0_i32_0 = arith.constant 0 : i32
    %c0_i32_1 = arith.constant 0 : i32
    return %arg0, %c0_i32, %c0_i32_0 : i32, i32, i32
  }
  func.func @transform_2(%arg0: i32) -> (i32, i32) {
    %c0_i32 = arith.constant 0 : i32
    %c0_i32_0 = arith.constant 0 : i32
    %c0_i32_1 = arith.constant 0 : i32
    return %c0_i32, %c0_i32_0 : i32, i32
  }
  func.func @transform_3(%arg0: i32) -> (i32, i32) {
    %c0_i32 = arith.constant 0 : i32
    %c0_i32_0 = arith.constant 0 : i32
    %c0_i32_1 = arith.constant 0 : i32
    return %c0_i32, %c0_i32_0 : i32, i32
  }
  func.func @transform_4(%arg0: i32) -> (i32, i32) {
    %c0_i32 = arith.constant 0 : i32
    %c0_i32_0 = arith.constant 0 : i32
    %c0_i32_1 = arith.constant 0 : i32
    return %c0_i32, %c0_i32_0 : i32, i32
  }
  func.func @transform_5(%arg0: i32) -> (i32, i32) {
    %c0_i32 = arith.constant 0 : i32
    %c0_i32_0 = arith.constant 0 : i32
    %c0_i32_1 = arith.constant 0 : i32
    return %c0_i32, %c0_i32_0 : i32, i32
  }
  func.func @transform_6(%arg0: i32) -> (i32, i32) {
    %c0_i32 = arith.constant 0 : i32
    %c0_i32_0 = arith.constant 0 : i32
    %c0_i32_1 = arith.constant 0 : i32
    return %c0_i32, %c0_i32_0 : i32, i32
  }
  func.func @transform_7(%arg0: i32) -> (i32, i32) {
    %c0_i32 = arith.constant 0 : i32
    %c0_i32_0 = arith.constant 0 : i32
    %c0_i32_1 = arith.constant 0 : i32
    return %c0_i32, %c0_i32_0 : i32, i32
  }
  func.func @transform_8(%arg0: i32) -> (i32, i32) {
    %c0_i32 = arith.constant 0 : i32
    %c0_i32_0 = arith.constant 0 : i32
    %c0_i32_1 = arith.constant 0 : i32
    return %c0_i32, %c0_i32_0 : i32, i32
  }
  func.func @transform_9(%arg0: i32) -> (i32, i32) {
    %c0_i32 = arith.constant 0 : i32
    %c0_i32_0 = arith.constant 0 : i32
    %c0_i32_1 = arith.constant 0 : i32
    return %c0_i32, %c0_i32_0 : i32, i32
  }
  func.func @transform_10(%arg0: i32) -> (i32, i32, i32) {
    %c0_i32 = arith.constant 0 : i32
    %c0_i32_0 = arith.constant 0 : i32
    %c0_i32_1 = arith.constant 0 : i32
    return %arg0, %c0_i32, %c0_i32_0 : i32, i32, i32
  }
}

</mosaic_0001>

<llo_original>
// kernel: tpu_custom_call.1
$region0: #{tpu_custom_call.1}
  #allocation0 [shape = 'u32[]', space=smem, size = 0x4, offset = 0x4, fixed_abs, tag = 'smem constant byte address 0x4 - core index']
  #allocation1 [shape = 'u32[72,128]{1,0:T(1,128)}', space=vmem, size = 0x9000, scoped, tag = 'internal scratch']
  %s0 = inlined_call_operand.vmem [shape: f32[2,8,32], index: 0, kind: input, shape index: {}]
  %s1 = inlined_call_operand.vmem [shape: f32[2,8,8], index: 1, kind: input, shape index: {}]
  %s2 = inlined_call_operand.vmem [shape: bf16[32,96], index: 2, kind: input, shape index: {}]
  %s3 = inlined_call_operand.vmem [shape: f32[1,96], index: 3, kind: input, shape index: {}]
  %s4 = inlined_call_operand.hbm [shape: bf16[32,32], index: 4, kind: input, shape index: {}]
  %s5 = inlined_call_operand.vmem [shape: f32[1,32], index: 5, kind: input, shape index: {}]
  %s6 = inlined_call_operand.hbm [shape: bf16[32,64], index: 6, kind: input, shape index: {}]
  %s7 = inlined_call_operand.vmem [shape: f32[1,64], index: 7, kind: input, shape index: {}]
  %s8 = inlined_call_operand.vmem [shape: bf16[64,32], index: 8, kind: input, shape index: {}]
  %s9 = inlined_call_operand.vmem [shape: f32[1,32], index: 9, kind: input, shape index: {}]
  %s10 = inlined_call_operand.hbm [shape: f32[2,8,32], index: 10, kind: output, shape index: {}]
  %s11 = sld [smem:[#allocation0]]
  $region81: #{tpu_custom_call.1} parent=0
    _
  %s13 = ssub.s32 1, %s11
  %s14 = scalar_select 0, %s13, %s11
  $region1: #{tpu_custom_call.1} parent=0
    #allocation2 [shape = 'u8[8192]{0}', space=vmem, size = 0x2000, scoped, tag = 'input window, operand 4, single buffered']
    #allocation3 [shape = 's32[2]{0}', space=sflag, size = 0x8, scoped, tag = 'scoped memory for tpu_custom_call.1']
    #allocation4 [shape = 's32[2]{0}', space=sflag, size = 0x8, scoped, tag = 'scoped memory for tpu_custom_call.1']
    #allocation5 [shape = 'u8[8192]{0}', space=vmem, size = 0x2000, scoped, tag = 'input window, operand 6, single buffered']
    #allocation6 [shape = 's32[1]{0}', space=sflag, size = 0x4, scoped, tag = 'scoped memory for tpu_custom_call.1']
    #allocation7 [shape = 'u8[8192]{0}', space=vmem, size = 0x2000, scoped, tag = 'output window, operand 0']
    %15 = vsyncpa [#allocation3], 0
    %16 = vsyncpa [#allocation6], 0
    %17 = vsyncpa [#allocation4], 0
    %s18 = scalar_lea.sflag [#allocation4], 1
    %19 = vsyncpa %s18, 0
    loop: start=0, step=1, limit=4
    $region2: #{tpu_custom_call.1} parent=1 // loop_pre_header
      _
    $region3: #{tpu_custom_call.1} parent=1 // loop_header
      %s21 = sphi 0, %s25
      %p22 = scmp.ge.s32.totalorder %s21, 4
      %s31 = sphi 0, %s33
      %s34 = sphi 0, %s31
      %s35 = sphi 0, %s34
      %s51 = sphi 0, %s35
      %s57 = sphi 0, %s59
      %s60 = sphi 0, %s57
      %s61 = sphi 0, %s60
      %s77 = sphi 0, %s61
      %s81 = sphi 0, %s81
      %s83 = sphi 0, %s81
      %s84 = sphi 0, %s83
      %s98 = sphi 0, %s84
      %s102 = sphi 0, %s102
      %s104 = sphi 0, %s102
      %s105 = sphi 0, %s104
      %s119 = sphi 0, %s105
      %s123 = sphi 0, %s123
      %s125 = sphi 0, %s123
      %s126 = sphi 0, %s125
      %s140 = sphi 0, %s126
      %s144 = sphi 0, %s144
      %s146 = sphi 0, %s144
      %s147 = sphi 0, %s146
      %s161 = sphi 0, %s147
      %s165 = sphi 0, %s165
      %s167 = sphi 0, %s165
      %s168 = sphi 0, %s167
      %s182 = sphi 0, %s168
      %s186 = sphi 0, %s186
      %s188 = sphi 0, %s186
      %s189 = sphi 0, %s188
      %s203 = sphi 0, %s189
      %s207 = sphi 0, %s207
      %s209 = sphi 0, %s207
      %s210 = sphi 0, %s209
      %s224 = sphi 0, %s210
      %s228 = sphi 0, %s228
      %s230 = sphi 0, %s228
      %s231 = sphi 0, %s230
      %s245 = sphi 0, %s231
      %s251 = sphi 0, %s253
      %s254 = sphi 0, %s251
      %s255 = sphi 0, %s254
      %s271 = sphi 0, %s255
    $region4: #{tpu_custom_call.1} parent=1 // loop_header_branch
      %24 = sbr.rel (%p22) target = $region8
    $region5: #{tpu_custom_call.1} parent=1 // loop_body
      %s26 = ssub.s32 %s21, 1
      %s27 = ssub.s32 %s21, 2
      %s28 = sadd.s32 %s21, 1
      %s29 = ssub.s32 %s21, %s28
      %p30 = scmp.eq.s32.totalorder %s29, 0
      %s32 = sadd.s32 %s31, 1
      %s33 = scalar_select %p30, %s31, %s32
      %p36 = pneg %p30
      %p37 = scmp.eq.s32.totalorder %s21, 1
      %p38 = por %p36, %p37
      %p39 = scmp.ne.s32.totalorder %s31, %s34
      %p40 = scmp.eq.s32.totalorder %s21, 0
      %p41 = por %p39, %p40
      %p42 = scmp.ne.s32.totalorder %s31, %s34
      %p43 = scmp.eq.s32.totalorder %s26, 1
      %p44 = por %p42, %p43
      %p45 = scmp.ne.s32.totalorder %s34, %s35
      %p46 = scmp.eq.s32.totalorder %s26, 0
      %p47 = por %p45, %p46
      %p48 = scmp.ne.s32.totalorder %s34, %s35
      %p49 = scmp.eq.s32.totalorder %s27, 1
      %p50 = por %p48, %p49
      %p52 = scmp.ne.s32.totalorder %s35, %s51
      %p53 = scmp.eq.s32.totalorder %s27, 0
      %p54 = por %p52, %p53
      %s55 = ssub.s32 %s21, %s28
      %p56 = scmp.eq.s32.totalorder %s55, 0
      %s58 = sadd.s32 %s57, 1
      %s59 = scalar_select %p56, %s57, %s58
      %p62 = pneg %p56
      %p63 = scmp.eq.s32.totalorder %s21, 1
      %p64 = por %p62, %p63
      %p65 = scmp.ne.s32.totalorder %s57, %s60
      %p66 = scmp.eq.s32.totalorder %s21, 0
      %p67 = por %p65, %p66
      %p68 = scmp.ne.s32.totalorder %s57, %s60
      %p69 = scmp.eq.s32.totalorder %s26, 1
      %p70 = por %p68, %p69
      %p71 = scmp.ne.s32.totalorder %s60, %s61
      %p72 = scmp.eq.s32.totalorder %s26, 0
      %p73 = por %p71, %p72
      %p74 = scmp.ne.s32.totalorder %s60, %s61
      %p75 = scmp.eq.s32.totalorder %s27, 1
      %p76 = por %p74, %p75
      %p78 = scmp.ne.s32.totalorder %s61, %s77
      %p79 = scmp.eq.s32.totalorder %s27, 0
      %p80 = por %p78, %p79
      %s82 = sadd.s32 %s81, 1
      %p85 = scmp.eq.s32.totalorder %s21, 1
      %p86 = scmp.ne.s32.totalorder %s81, %s83
      %p87 = scmp.eq.s32.totalorder %s21, 0
      %p88 = por %p86, %p87
      %p89 = scmp.ne.s32.totalorder %s81, %s83
      %p90 = scmp.eq.s32.totalorder %s26, 1
      %p91 = por %p89, %p90
      %p92 = scmp.ne.s32.totalorder %s83, %s84
      %p93 = scmp.eq.s32.totalorder %s26, 0
      %p94 = por %p92, %p93
      %p95 = scmp.ne.s32.totalorder %s83, %s84
      %p96 = scmp.eq.s32.totalorder %s27, 1
      %p97 = por %p95, %p96
      %p99 = scmp.ne.s32.totalorder %s84, %s98
      %p100 = scmp.eq.s32.totalorder %s27, 0
      %p101 = por %p99, %p100
      %s103 = sadd.s32 %s102, 1
      %p106 = scmp.eq.s32.totalorder %s21, 1
      %p107 = scmp.ne.s32.totalorder %s102, %s104
      %p108 = scmp.eq.s32.totalorder %s21, 0
      %p109 = por %p107, %p108
      %p110 = scmp.ne.s32.totalorder %s102, %s104
      %p111 = scmp.eq.s32.totalorder %s26, 1
      %p112 = por %p110, %p111
      %p113 = scmp.ne.s32.totalorder %s104, %s105
      %p114 = scmp.eq.s32.totalorder %s26, 0
      %p115 = por %p113, %p114
      %p116 = scmp.ne.s32.totalorder %s104, %s105
      %p117 = scmp.eq.s32.totalorder %s27, 1
      %p118 = por %p116, %p117
      %p120 = scmp.ne.s32.totalorder %s105, %s119
      %p121 = scmp.eq.s32.totalorder %s27, 0
      %p122 = por %p120, %p121
      %s124 = sadd.s32 %s123, 1
      %p127 = scmp.eq.s32.totalorder %s21, 1
      %p128 = scmp.ne.s32.totalorder %s123, %s125
      %p129 = scmp.eq.s32.totalorder %s21, 0
      %p130 = por %p128, %p129
      %p131 = scmp.ne.s32.totalorder %s123, %s125
      %p132 = scmp.eq.s32.totalorder %s26, 1
      %p133 = por %p131, %p132
      %p134 = scmp.ne.s32.totalorder %s125, %s126
      %p135 = scmp.eq.s32.totalorder %s26, 0
      %p136 = por %p134, %p135
      %p137 = scmp.ne.s32.totalorder %s125, %s126
      %p138 = scmp.eq.s32.totalorder %s27, 1
      %p139 = por %p137, %p138
      %p141 = scmp.ne.s32.totalorder %s126, %s140
      %p142 = scmp.eq.s32.totalorder %s27, 0
      %p143 = por %p141, %p142
      %s145 = sadd.s32 %s144, 1
      %p148 = scmp.eq.s32.totalorder %s21, 1
      %p149 = scmp.ne.s32.totalorder %s144, %s146
      %p150 = scmp.eq.s32.totalorder %s21, 0
      %p151 = por %p149, %p150
      %p152 = scmp.ne.s32.totalorder %s144, %s146
      %p153 = scmp.eq.s32.totalorder %s26, 1
      %p154 = por %p152, %p153
      %p155 = scmp.ne.s32.totalorder %s146, %s147
      %p156 = scmp.eq.s32.totalorder %s26, 0
      %p157 = por %p155, %p156
      %p158 = scmp.ne.s32.totalorder %s146, %s147
      %p159 = scmp.eq.s32.totalorder %s27, 1
      %p160 = por %p158, %p159
      %p162 = scmp.ne.s32.totalorder %s147, %s161
      %p163 = scmp.eq.s32.totalorder %s27, 0
      %p164 = por %p162, %p163
      %s166 = sadd.s32 %s165, 1
      %p169 = scmp.eq.s32.totalorder %s21, 1
      %p170 = scmp.ne.s32.totalorder %s165, %s167
      %p171 = scmp.eq.s32.totalorder %s21, 0
      %p172 = por %p170, %p171
      %p173 = scmp.ne.s32.totalorder %s165, %s167
      %p174 = scmp.eq.s32.totalorder %s26, 1
      %p175 = por %p173, %p174
      %p176 = scmp.ne.s32.totalorder %s167, %s168
      %p177 = scmp.eq.s32.totalorder %s26, 0
      %p178 = por %p176, %p177
      %p179 = scmp.ne.s32.totalorder %s167, %s168
      %p180 = scmp.eq.s32.totalorder %s27, 1
      %p181 = por %p179, %p180
      %p183 = scmp.ne.s32.totalorder %s168, %s182
      %p184 = scmp.eq.s32.totalorder %s27, 0
      %p185 = por %p183, %p184
      %s187 = sadd.s32 %s186, 1
      %p190 = scmp.eq.s32.totalorder %s21, 1
      %p191 = scmp.ne.s32.totalorder %s186, %s188
      %p192 = scmp.eq.s32.totalorder %s21, 0
      %p193 = por %p191, %p192
      %p194 = scmp.ne.s32.totalorder %s186, %s188
      %p195 = scmp.eq.s32.totalorder %s26, 1
      %p196 = por %p194, %p195
      %p197 = scmp.ne.s32.totalorder %s188, %s189
      %p198 = scmp.eq.s32.totalorder %s26, 0
      %p199 = por %p197, %p198
      %p200 = scmp.ne.s32.totalorder %s188, %s189
      %p201 = scmp.eq.s32.totalorder %s27, 1
      %p202 = por %p200, %p201
      %p204 = scmp.ne.s32.totalorder %s189, %s203
      %p205 = scmp.eq.s32.totalorder %s27, 0
      %p206 = por %p204, %p205
      %s208 = sadd.s32 %s207, 1
      %p211 = scmp.eq.s32.totalorder %s21, 1
      %p212 = scmp.ne.s32.totalorder %s207, %s209
      %p213 = scmp.eq.s32.totalorder %s21, 0
      %p214 = por %p212, %p213
      %p215 = scmp.ne.s32.totalorder %s207, %s209
      %p216 = scmp.eq.s32.totalorder %s26, 1
      %p217 = por %p215, %p216
      %p218 = scmp.ne.s32.totalorder %s209, %s210
      %p219 = scmp.eq.s32.totalorder %s26, 0
      %p220 = por %p218, %p219
      %p221 = scmp.ne.s32.totalorder %s209, %s210
      %p222 = scmp.eq.s32.totalorder %s27, 1
      %p223 = por %p221, %p222
      %p225 = scmp.ne.s32.totalorder %s210, %s224
      %p226 = scmp.eq.s32.totalorder %s27, 0
      %p227 = por %p225, %p226
      %s229 = sadd.s32 %s228, 1
      %p232 = scmp.eq.s32.totalorder %s21, 1
      %p233 = scmp.ne.s32.totalorder %s228, %s230
      %p234 = scmp.eq.s32.totalorder %s21, 0
      %p235 = por %p233, %p234
      %p236 = scmp.ne.s32.totalorder %s228, %s230
      %p237 = scmp.eq.s32.totalorder %s26, 1
      %p238 = por %p236, %p237
      %p239 = scmp.ne.s32.totalorder %s230, %s231
      %p240 = scmp.eq.s32.totalorder %s26, 0
      %p241 = por %p239, %p240
      %p242 = scmp.ne.s32.totalorder %s230, %s231
      %p243 = scmp.eq.s32.totalorder %s27, 1
      %p244 = por %p242, %p243
      %p246 = scmp.ne.s32.totalorder %s231, %s245
      %p247 = scmp.eq.s32.totalorder %s27, 0
      %p248 = por %p246, %p247
      %s249 = ssub.s32 %s21, %s28
      %p250 = scmp.eq.s32.totalorder %s249, 0
      %s252 = sadd.s32 %s251, 1
      %s253 = scalar_select %p250, %s251, %s252
      %p256 = pneg %p250
      %p257 = scmp.eq.s32.totalorder %s21, 1
      %p258 = por %p256, %p257
      %p259 = scmp.ne.s32.totalorder %s251, %s254
      %p260 = scmp.eq.s32.totalorder %s21, 0
      %p261 = por %p259, %p260
      %p262 = scmp.ne.s32.totalorder %s251, %s254
      %p263 = scmp.eq.s32.totalorder %s26, 1
      %p264 = por %p262, %p263
      %p265 = scmp.ne.s32.totalorder %s254, %s255
      %p266 = scmp.eq.s32.totalorder %s26, 0
      %p267 = por %p265, %p266
      %p268 = scmp.ne.s32.totalorder %s254, %s255
      %p269 = scmp.eq.s32.totalorder %s27, 1
      %p270 = por %p268, %p269
      %p272 = scmp.ne.s32.totalorder %s255, %s271
      %p273 = scmp.eq.s32.totalorder %s27, 0
      %p274 = por %p272, %p273
      %p275 = scmp.le.s32.totalorder 1, %s21
      %p276 = scmp.lt.s32.totalorder %s21, 3
      %p277 = pnand %p275, %p276
      %p278 = pneg %p277
      // Predicated region
      $region9: #{tpu_custom_call.1} parent=5 // pred_check
        _
      $region10: #{tpu_custom_call.1} parent=5 // pred_check_branch
        %280 = sbr.rel (%p277) target = $region12
      $region11: #{tpu_custom_call.1} parent=5 // pred_region
        %s281 = ssub.s32 %s21, 1
        // Predicated region
        $region13: #{tpu_custom_call.1} parent=11 // pred_check
          %p282 = pneg %p94
        $region14: #{tpu_custom_call.1} parent=11 // pred_check_branch
          %284 = sbr.rel (%p282) target = $region16
        $region15: #{tpu_custom_call.1} parent=11 // pred_region
          _
        $region16: #{tpu_custom_call.1} parent=11 // pred_fallthru
          _
        // Predicated region
        $region17: #{tpu_custom_call.1} parent=11 // pred_check
          %p285 = pneg %p115
        $region18: #{tpu_custom_call.1} parent=11 // pred_check_branch
          %287 = sbr.rel (%p285) target = $region20
        $region19: #{tpu_custom_call.1} parent=11 // pred_region
          _
        $region20: #{tpu_custom_call.1} parent=11 // pred_fallthru
          _
        // Predicated region
        $region21: #{tpu_custom_call.1} parent=11 // pred_check
          %p288 = pneg %p136
        $region22: #{tpu_custom_call.1} parent=11 // pred_check_branch
          %290 = sbr.rel (%p288) target = $region24
        $region23: #{tpu_custom_call.1} parent=11 // pred_region
          %292 = vsyncadd [#allocation3], 0
          %s293 = sshll.u32 %s4, 4
          %s294 = int_to_ptr.hbm [resolvable:$true] %s293
          %s295 = sshll.u32 [#allocation2], 4
          %s296 = int_to_ptr.vmem [resolvable:$true] %s295
          %301 = dma.hbm_to_vmem [thread:$0]  %s294, 256, %s296, [#allocation3], 64, 64, 4
        $region24: #{tpu_custom_call.1} parent=11 // pred_fallthru
          _
        // Predicated region
        $region25: #{tpu_custom_call.1} parent=11 // pred_check
          %p302 = pneg %p157
        $region26: #{tpu_custom_call.1} parent=11 // pred_check_branch
          %304 = sbr.rel (%p302) target = $region28
        $region27: #{tpu_custom_call.1} parent=11 // pred_region
          _
        $region28: #{tpu_custom_call.1} parent=11 // pred_fallthru
          _
        // Predicated region
        $region29: #{tpu_custom_call.1} parent=11 // pred_check
          %p305 = pneg %p178
        $region30: #{tpu_custom_call.1} parent=11 // pred_check_branch
          %307 = sbr.rel (%p305) target = $region32
        $region31: #{tpu_custom_call.1} parent=11 // pred_region
          %309 = vsyncadd [#allocation6], 0
          %s310 = sshll.u32 %s6, 4
          %s311 = int_to_ptr.hbm [resolvable:$true] %s310
          %s312 = sshll.u32 [#allocation5], 4
          %s313 = int_to_ptr.vmem [resolvable:$true] %s312
          %318 = dma.hbm_to_vmem [thread:$0]  %s311, 256, %s313, [#allocation6], 64, 64, 4
        $region32: #{tpu_custom_call.1} parent=11 // pred_fallthru
          _
        // Predicated region
        $region33: #{tpu_custom_call.1} parent=11 // pred_check
          %p319 = pneg %p199
        $region34: #{tpu_custom_call.1} parent=11 // pred_check_branch
          %321 = sbr.rel (%p319) target = $region36
        $region35: #{tpu_custom_call.1} parent=11 // pred_region
          _
        $region36: #{tpu_custom_call.1} parent=11 // pred_fallthru
          _
        // Predicated region
        $region37: #{tpu_custom_call.1} parent=11 // pred_check
          %p322 = pneg %p220
        $region38: #{tpu_custom_call.1} parent=11 // pred_check_branch
          %324 = sbr.rel (%p322) target = $region40
        $region39: #{tpu_custom_call.1} parent=11 // pred_region
          _
        $region40: #{tpu_custom_call.1} parent=11 // pred_fallthru
          _
        // Predicated region
        $region41: #{tpu_custom_call.1} parent=11 // pred_check
          %p325 = pneg %p241
        $region42: #{tpu_custom_call.1} parent=11 // pred_check_branch
          %327 = sbr.rel (%p325) target = $region44
        $region43: #{tpu_custom_call.1} parent=11 // pred_region
          _
        $region44: #{tpu_custom_call.1} parent=11 // pred_fallthru
          _
      $region12: #{tpu_custom_call.1} parent=5 // pred_fallthru
        _
      %p328 = scmp.lt.s32.totalorder %s21, 2
      // Predicated region
      $region45: #{tpu_custom_call.1} parent=5 // pred_check
        %p329 = pneg %p328
      $region46: #{tpu_custom_call.1} parent=5 // pred_check_branch
        %331 = sbr.rel (%p329) target = $region48
      $region47: #{tpu_custom_call.1} parent=5 // pred_region
        // Predicated region
        $region49: #{tpu_custom_call.1} parent=47 // pred_check
          %p332 = pneg %p41
        $region50: #{tpu_custom_call.1} parent=47 // pred_check_branch
          %334 = sbr.rel (%p332) target = $region52
        $region51: #{tpu_custom_call.1} parent=47 // pred_region
          %p335 = scmp.lt.s32.totalorder %s21, 1
          %s336 = scalar_select %p335, %s21, 1
          %s337 = smul.addr %s336, 8
          %s338 = scalar_lea.vmem %s0, %s337
        $region52: #{tpu_custom_call.1} parent=47 // pred_fallthru
          _
        // Predicated region
        $region53: #{tpu_custom_call.1} parent=47 // pred_check
          %p339 = pneg %p67
        $region54: #{tpu_custom_call.1} parent=47 // pred_check_branch
          %341 = sbr.rel (%p339) target = $region56
        $region55: #{tpu_custom_call.1} parent=47 // pred_region
          %p342 = scmp.lt.s32.totalorder %s21, 1
          %s343 = scalar_select %p342, %s21, 1
          %s344 = smul.addr %s343, 8
          %s345 = scalar_lea.vmem %s1, %s344
        $region56: #{tpu_custom_call.1} parent=47 // pred_fallthru
          _
      $region48: #{tpu_custom_call.1} parent=5 // pred_fallthru
        _
      %p346 = scmp.le.s32.totalorder 1, %s21
      %p347 = scmp.lt.s32.totalorder %s21, 3
      %p348 = pnand %p346, %p347
      %p349 = pneg %p348
      // Predicated region
      $region57: #{tpu_custom_call.1} parent=5 // pred_check
        _
      $region58: #{tpu_custom_call.1} parent=5 // pred_check_branch
        %351 = sbr.rel (%p348) target = $region60
      $region59: #{tpu_custom_call.1} parent=5 // pred_region
        %s352 = ssub.s32 %s21, 1
        // Predicated region
        $region61: #{tpu_custom_call.1} parent=59 // pred_check
          %p353 = pneg %p136
        $region62: #{tpu_custom_call.1} parent=59 // pred_check_branch
          %355 = sbr.rel (%p353) target = $region64
        $region63: #{tpu_custom_call.1} parent=59 // pred_region
          %357 = dma.done [#allocation3], 256
        $region64: #{tpu_custom_call.1} parent=59 // pred_fallthru
          _
        // Predicated region
        $region65: #{tpu_custom_call.1} parent=59 // pred_check
          %p358 = pneg %p178
        $region66: #{tpu_custom_call.1} parent=59 // pred_check_branch
          %360 = sbr.rel (%p358) target = $region68
        $region67: #{tpu_custom_call.1} parent=59 // pred_region
          %362 = dma.done [#allocation6], 256
        $region68: #{tpu_custom_call.1} parent=59 // pred_fallthru
          _
        %p363 = scmp.lt.s32.totalorder %s26, 1
        %s364 = scalar_select %p363, %s26, 1
        %s365 = smul.addr %s364, 8
        %s366 = scalar_lea.vmem %s0, %s365
        %p367 = pneg %p47
        %p368 = pneg %p44
        %p369 = scmp.lt.s32.totalorder %s26, 1
        %s370 = scalar_select %p369, %s26, 1
        %s371 = smul.addr %s370, 8
        %s372 = scalar_lea.vmem %s1, %s371
        %p373 = pneg %p73
        %p374 = pneg %p70
        %p375 = pneg %p94
        %p376 = pneg %p91
        %p377 = pneg %p115
        %p378 = pneg %p112
        %p379 = pneg %p136
        %p380 = pneg %p133
        %p381 = pneg %p157
        %p382 = pneg %p154
        %p383 = pneg %p178
        %p384 = pneg %p175
        %p385 = pneg %p199
        %p386 = pneg %p196
        %p387 = pneg %p220
        %p388 = pneg %p217
        %p389 = pneg %p241
        %p390 = pneg %p238
        %p391 = pneg %p267
        %p392 = pneg %p264
        %s393 = sand.u32 %s254, 1
        %s394 = scalar_lea.sflag [#allocation4], %s393
        %s395 = sand.u32 %s254, 1
        %s396 = smul.addr %s395, 8
        %s397 = scalar_lea.vmem [#allocation7], %s396
        %p398 = scmp.lt.s32.totalorder %s26, 1
        %s399 = scalar_select %p398, %s26, 1
        %s400 = smul.addr %s399, 8
        %s401 = scalar_lea.vmem %s0, %s400
        %p402 = scmp.lt.s32.totalorder %s26, 1
        %s403 = scalar_select %p402, %s26, 1
        %s404 = smul.addr %s403, 8
        %s405 = scalar_lea.vmem %s1, %s404
        %v407 = vld [vmem:[%s401] sm:$0xff]
        %v408 = vld [vmem:[%s405] sm:$0xff]
        %v409 = vpack.c.bf16 %v407, %v407
        %v410 = vld [vmem:[%s2] sm:$0xf]
        %v411 = vld [vmem:[%s2 + $0x4] sm:$0xf]
        %v412 = vld [vmem:[%s2 + $0x8] sm:$0xf]
        %v413 = vld [vmem:[%s2 + $0xc] sm:$0xf]
        %v414 = vld [vmem:[%s3] sm:$0x1]
        %v416 = vperm.slane %v414, 0
        %v422 = vunpack.c.l.b16 %v410
        %v423 = vunpack.c.l.b16 %v411
        %v424 = vunpack.c.l.b16 %v412
        %v425 = vunpack.c.l.b16 %v413
        %v426 = vpack.c.b16 %v423, %v422
        %v427 = vpack.c.b16 %v425, %v424
        %vm430 = vcmask 261120
        %v432 = vsel %vm430, %v409, 0
        %434 = vmatpush.bf16.msra.mxu0 0
        %435 = vmatpush.bf16.msra.mxu0 0
        %436 = vmatpush.bf16.msra.mxu0 0
        %437 = vmatpush.bf16.msra.mxu0 0
        %438 = vmatpush.bf16.msra.mxu0 0
        %439 = vmatpush.bf16.msra.mxu0 0
        %440 = vmatpush.bf16.msra.mxu0 %v427
        %441 = vmatpush.bf16.msra.mxu0 %v426
        %442 = vmatmul.bf16.gmra.mxu0 %v432
        %v443 = vpop.f32.mrf.mxu0
        %v444 = vadd.f32 %v416, %v443
        %v445 = vpop.f32.mrf.mxu0
        %446 = vdwg.mxu0
        %v447 = vmul.f32 %v444, 0.35355338
        %449 = vrot.lane.b32.xlu0 %v447, 120
        %v450 = vpop.permute.xlu0 %449
        %452 = vrot.lane.b32.xlu0 %v447, 112
        %v453 = vpop.permute.xlu0 %452
        %455 = vrot.lane.b32.xlu0 %v447, 104
        %v456 = vpop.permute.xlu0 %455
        %v458 = vpack.c.bf16 %v447, %v447
        %v459 = vpack.c.bf16 %v450, %v450
        %v460 = vpack.c.bf16 %v453, %v453
        %v461 = vpack.c.bf16 %v456, %v456
        %463 = vrot.lane.b32.xlu0 %v444, 120
        %v464 = vpop.permute.xlu0 %463
        %466 = vrot.lane.b32.xlu0 %v444, 112
        %v467 = vpop.permute.xlu0 %466
        %469 = vrot.lane.b32.xlu0 %v444, 104
        %v470 = vpop.permute.xlu0 %469
        %v472 = vpack.c.bf16 %v444, %v444
        %v473 = vpack.c.bf16 %v464, %v464
        %v474 = vpack.c.bf16 %v467, %v467
        %v475 = vpack.c.bf16 %v470, %v470
        %v477 = vunpack.c.l.b16 %v472
        %v478 = vpack.c.b16 %v477, %v477
        %479 = vrot.lane.b32.xlu0 %v478, 96
        %v480 = vpop.permute.xlu0 %479
        %vm481 = vcmask 64512
        %v483 = vsel %vm481, %v458, 0
        %v486 = vsel %vm481, %v480, 0
        %488 = vmatpush.bf16.xpose.msra.mxu0 0
        %489 = vmatpush.bf16.xpose.msra.mxu0 0
        %490 = vmatpush.bf16.xpose.msra.mxu0 0
        %491 = vmatpush.bf16.xpose.msra.mxu0 0
        %492 = vmatpush.bf16.xpose.msra.mxu0 0
        %493 = vmatpush.bf16.xpose.msra.mxu0 0
        %494 = vmatpush.bf16.xpose.msra.mxu0 0
        %495 = vmatpush.bf16.xpose.msra.mxu0 %v486
        %496 = vmatmul.bf16.gmra.mxu0 %v483
        %v497 = vpop.f32.mrf.mxu0
        %v498 = vadd.f32 %v408, %v497
        %v499 = vpop.f32.mrf.mxu0
        %500 = vdwg.mxu0
        %v502 = vunpack.c.l.b16 %v473
        %v503 = vpack.c.b16 %v502, %v502
        %504 = vrot.lane.b32.xlu0 %v503, 96
        %v505 = vpop.permute.xlu0 %504
        %v507 = vsel %vm481, %v459, 0
        %v510 = vsel %vm481, %v505, 0
        %512 = vmatpush.bf16.xpose.msra.mxu0 0
        %513 = vmatpush.bf16.xpose.msra.mxu0 0
        %514 = vmatpush.bf16.xpose.msra.mxu0 0
        %515 = vmatpush.bf16.xpose.msra.mxu0 0
        %516 = vmatpush.bf16.xpose.msra.mxu0 0
        %517 = vmatpush.bf16.xpose.msra.mxu0 0
        %518 = vmatpush.bf16.xpose.msra.mxu0 0
        %519 = vmatpush.bf16.xpose.msra.mxu0 %v510
        %520 = vmatmul.bf16.gmra.mxu0 %v507
        %v521 = vpop.f32.mrf.mxu0
        %v522 = vadd.f32 %v408, %v521
        %v523 = vpop.f32.mrf.mxu0
        %524 = vdwg.mxu0
        %v526 = vunpack.c.l.b16 %v474
        %v527 = vpack.c.b16 %v526, %v526
        %528 = vrot.lane.b32.xlu0 %v527, 96
        %v529 = vpop.permute.xlu0 %528
        %v531 = vsel %vm481, %v460, 0
        %v534 = vsel %vm481, %v529, 0
        %536 = vmatpush.bf16.xpose.msra.mxu0 0
        %537 = vmatpush.bf16.xpose.msra.mxu0 0
        %538 = vmatpush.bf16.xpose.msra.mxu0 0
        %539 = vmatpush.bf16.xpose.msra.mxu0 0
        %540 = vmatpush.bf16.xpose.msra.mxu0 0
        %541 = vmatpush.bf16.xpose.msra.mxu0 0
        %542 = vmatpush.bf16.xpose.msra.mxu0 0
        %543 = vmatpush.bf16.xpose.msra.mxu0 %v534
        %544 = vmatmul.bf16.gmra.mxu0 %v531
        %v545 = vpop.f32.mrf.mxu0
        %v546 = vadd.f32 %v408, %v545
        %v547 = vpop.f32.mrf.mxu0
        %548 = vdwg.mxu0
        %v550 = vunpack.c.l.b16 %v475
        %v551 = vpack.c.b16 %v550, %v550
        %552 = vrot.lane.b32.xlu0 %v551, 96
        %v553 = vpop.permute.xlu0 %552
        %v555 = vsel %vm481, %v461, 0
        %v558 = vsel %vm481, %v553, 0
        %560 = vmatpush.bf16.xpose.msra.mxu0 0
        %561 = vmatpush.bf16.xpose.msra.mxu0 0
        %562 = vmatpush.bf16.xpose.msra.mxu0 0
        %563 = vmatpush.bf16.xpose.msra.mxu0 0
        %564 = vmatpush.bf16.xpose.msra.mxu0 0
        %565 = vmatpush.bf16.xpose.msra.mxu0 0
        %566 = vmatpush.bf16.xpose.msra.mxu0 0
        %567 = vmatpush.bf16.xpose.msra.mxu0 %v558
        %568 = vmatmul.bf16.gmra.mxu0 %v555
        %v569 = vpop.f32.mrf.mxu0
        %v570 = vadd.f32 %v408, %v569
        %v571 = vpop.f32.mrf.mxu0
        %572 = vdwg.mxu0
        %v573 = vsel %vm481, %v498, -inf
        %574 = vmax.xlane.f32.xlu0 %v573
        %v575 = vpop.xlane.xlu0 %574
        %v576 = vsel %vm481, %v522, -inf
        %577 = vmax.xlane.f32.xlu0 %v576
        %v578 = vpop.xlane.xlu0 %577
        %v579 = vsel %vm481, %v546, -inf
        %580 = vmax.xlane.f32.xlu0 %v579
        %v581 = vpop.xlane.xlu0 %580
        %v582 = vsel %vm481, %v570, -inf
        %583 = vmax.xlane.f32.xlu0 %v582
        %v584 = vpop.xlane.xlu0 %583
        %v585 = vsub.f32 %v498, %v575
        %v586 = vsub.f32 %v522, %v578
        %v587 = vsub.f32 %v546, %v581
        %v588 = vsub.f32 %v570, %v584
        %v589 = vmul.f32 %v585, 1.442695
        %v590 = vpow.pop %v589
        %v591 = vmul.f32 %v586, 1.442695
        %v592 = vpow.pop %v591
        %v593 = vmul.f32 %v587, 1.442695
        %v594 = vpow.pop %v593
        %v595 = vmul.f32 %v588, 1.442695
        %v596 = vpow.pop %v595
        %v597 = vsel %vm481, %v590, 0.0
        %598 = vadd.xlane.f32.xlu0 %v597
        %v599 = vpop.xlane.xlu0 %598
        %v600 = vsel %vm481, %v592, 0.0
        %601 = vadd.xlane.f32.xlu0 %v600
        %v602 = vpop.xlane.xlu0 %601
        %v603 = vsel %vm481, %v594, 0.0
        %604 = vadd.xlane.f32.xlu0 %v603
        %v605 = vpop.xlane.xlu0 %604
        %v606 = vsel %vm481, %v596, 0.0
        %607 = vadd.xlane.f32.xlu0 %v606
        %v608 = vpop.xlane.xlu0 %607
        %v609 = vrcp.pop %v599
        %v610 = vrcp.pop %v602
        %v611 = vrcp.pop %v605
        %v612 = vrcp.pop %v608
        %v613 = vmul.f32 %v590, %v609
        %v614 = vmul.f32 %v592, %v610
        %v615 = vmul.f32 %v594, %v611
        %v616 = vmul.f32 %v596, %v612
        %v617 = vpack.c.bf16 %v613, %v613
        %v618 = vpack.c.bf16 %v614, %v614
        %v619 = vpack.c.bf16 %v615, %v615
        %v620 = vpack.c.bf16 %v616, %v616
        %621 = vrot.lane.b32.xlu0 %v478, 64
        %v622 = vpop.permute.xlu0 %621
        %v624 = vsel %vm481, %v617, 0
        %vm626 = vcmask 1043456
        %v628 = vsel %vm626, %v622, 0
        %630 = vmatpush.bf16.msra.mxu0 0
        %631 = vmatpush.bf16.msra.mxu0 0
        %632 = vmatpush.bf16.msra.mxu0 0
        %633 = vmatpush.bf16.msra.mxu0 0
        %634 = vmatpush.bf16.msra.mxu0 0
        %635 = vmatpush.bf16.msra.mxu0 0
        %636 = vmatpush.bf16.msra.mxu0 0
        %637 = vmatpush.bf16.msra.mxu0 %v628
        %638 = vmatmul.bf16.gmra.mxu0 %v624
        %v639 = vpop.f32.mrf.mxu0
        %v640 = vadd.f32 0.0, %v639
        %v641 = vpop.f32.mrf.mxu0
        %642 = vdwg.mxu0
        %643 = vrot.lane.b32.xlu0 %v503, 64
        %v644 = vpop.permute.xlu0 %643
        %v646 = vsel %vm481, %v618, 0
        %v649 = vsel %vm626, %v644, 0
        %651 = vmatpush.bf16.msra.mxu0 0
        %652 = vmatpush.bf16.msra.mxu0 0
        %653 = vmatpush.bf16.msra.mxu0 0
        %654 = vmatpush.bf16.msra.mxu0 0
        %655 = vmatpush.bf16.msra.mxu0 0
        %656 = vmatpush.bf16.msra.mxu0 0
        %657 = vmatpush.bf16.msra.mxu0 0
        %658 = vmatpush.bf16.msra.mxu0 %v649
        %659 = vmatmul.bf16.gmra.mxu0 %v646
        %v660 = vpop.f32.mrf.mxu0
        %v661 = vadd.f32 0.0, %v660
        %v662 = vpop.f32.mrf.mxu0
        %663 = vdwg.mxu0
        %664 = vrot.lane.b32.xlu0 %v527, 64
        %v665 = vpop.permute.xlu0 %664
        %v667 = vsel %vm481, %v619, 0
        %v670 = vsel %vm626, %v665, 0
        %672 = vmatpush.bf16.msra.mxu0 0
        %673 = vmatpush.bf16.msra.mxu0 0
        %674 = vmatpush.bf16.msra.mxu0 0
        %675 = vmatpush.bf16.msra.mxu0 0
        %676 = vmatpush.bf16.msra.mxu0 0
        %677 = vmatpush.bf16.msra.mxu0 0
        %678 = vmatpush.bf16.msra.mxu0 0
        %679 = vmatpush.bf16.msra.mxu0 %v670
        %680 = vmatmul.bf16.gmra.mxu0 %v667
        %v681 = vpop.f32.mrf.mxu0
        %v682 = vadd.f32 0.0, %v681
        %v683 = vpop.f32.mrf.mxu0
        %684 = vdwg.mxu0
        %685 = vrot.lane.b32.xlu0 %v551, 64
        %v686 = vpop.permute.xlu0 %685
        %v688 = vsel %vm481, %v620, 0
        %v691 = vsel %vm626, %v686, 0
        %693 = vmatpush.bf16.msra.mxu0 0
        %694 = vmatpush.bf16.msra.mxu0 0
        %695 = vmatpush.bf16.msra.mxu0 0
        %696 = vmatpush.bf16.msra.mxu0 0
        %697 = vmatpush.bf16.msra.mxu0 0
        %698 = vmatpush.bf16.msra.mxu0 0
        %699 = vmatpush.bf16.msra.mxu0 0
        %700 = vmatpush.bf16.msra.mxu0 %v691
        %701 = vmatmul.bf16.gmra.mxu0 %v688
        %v702 = vpop.f32.mrf.mxu0
        %v703 = vadd.f32 0.0, %v702
        %v704 = vpop.f32.mrf.mxu0
        %705 = vdwg.mxu0
        %707 = vrot.lane.b32.xlu0 %v661, 8
        %v708 = vpop.permute.xlu0 %707
        %711 = vrot.lane.b32.xlu0 %v682, 16
        %v712 = vpop.permute.xlu0 %711
        %715 = vrot.lane.b32.xlu0 %v703, 24
        %v716 = vpop.permute.xlu0 %715
        %v718 = vsel %vm481, %v640, %v708
        %vm719 = vcmask 130048
        %v720 = vsel %vm719, %v718, %v712
        %vm721 = vcmask 195584
        %v722 = vsel %vm721, %v720, %v716
        %v723 = vpack.c.bf16 %v722, %v722
        %v724 = vld [vmem:[#allocation2] sm:$0xf]
        %v725 = vld [vmem:[#allocation2 + $0x4] sm:$0xf]
        %v726 = vld [vmem:[#allocation2 + $0x8] sm:$0xf]
        %v727 = vld [vmem:[#allocation2 + $0xc] sm:$0xf]
        %v728 = vld [vmem:[%s5] sm:$0x1]
        %v730 = vperm.slane %v728, 0
        %v736 = vunpack.c.l.b16 %v724
        %v737 = vunpack.c.l.b16 %v725
        %v738 = vunpack.c.l.b16 %v726
        %v739 = vunpack.c.l.b16 %v727
        %v740 = vpack.c.b16 %v737, %v736
        %v741 = vpack.c.b16 %v739, %v738
        %v745 = vsel %vm430, %v723, 0
        %747 = vmatpush.bf16.msra.mxu0 0
        %748 = vmatpush.bf16.msra.mxu0 0
        %749 = vmatpush.bf16.msra.mxu0 0
        %750 = vmatpush.bf16.msra.mxu0 0
        %751 = vmatpush.bf16.msra.mxu0 0
        %752 = vmatpush.bf16.msra.mxu0 0
        %753 = vmatpush.bf16.msra.mxu0 %v741
        %754 = vmatpush.bf16.msra.mxu0 %v740
        %755 = vmatmul.bf16.gmra.mxu0 %v745
        %v756 = vpop.f32.mrf.mxu0
        %v757 = vadd.f32 %v730, %v756
        %v758 = vpop.f32.mrf.mxu0
        %759 = vdwg.mxu0
        %v760 = vadd.f32 %v407, %v757
        %v761 = vpack.c.bf16 %v760, %v760
        %v762 = vld [vmem:[#allocation5] sm:$0xf]
        %v763 = vld [vmem:[#allocation5 + $0x4] sm:$0xf]
        %v764 = vld [vmem:[#allocation5 + $0x8] sm:$0xf]
        %v765 = vld [vmem:[#allocation5 + $0xc] sm:$0xf]
        %v766 = vld [vmem:[%s7] sm:$0x1]
        %v768 = vperm.slane %v766, 0
        %v774 = vunpack.c.l.b16 %v762
        %v775 = vunpack.c.l.b16 %v763
        %v776 = vunpack.c.l.b16 %v764
        %v777 = vunpack.c.l.b16 %v765
        %v778 = vpack.c.b16 %v775, %v774
        %v779 = vpack.c.b16 %v777, %v776
        %v783 = vsel %vm430, %v761, 0
        %785 = vmatpush.bf16.msra.mxu0 0
        %786 = vmatpush.bf16.msra.mxu0 0
        %787 = vmatpush.bf16.msra.mxu0 0
        %788 = vmatpush.bf16.msra.mxu0 0
        %789 = vmatpush.bf16.msra.mxu0 0
        %790 = vmatpush.bf16.msra.mxu0 0
        %791 = vmatpush.bf16.msra.mxu0 %v779
        %792 = vmatpush.bf16.msra.mxu0 %v778
        %793 = vmatmul.bf16.gmra.mxu0 %v783
        %v794 = vpop.f32.mrf.mxu0
        %v795 = vadd.f32 %v768, %v794
        %v796 = vpop.f32.mrf.mxu0
        %797 = vdwg.mxu0
        %v798 = vmax.f32 %v795, 0.0
        %v799 = vpack.c.bf16 %v798, %v798
        %v800 = vld [vmem:[%s8] sm:$0xf]
        %v801 = vld [vmem:[%s8 + $0x4] sm:$0xf]
        %v802 = vld [vmem:[%s8 + $0x8] sm:$0xf]
        %v803 = vld [vmem:[%s8 + $0xc] sm:$0xf]
        %v804 = vld [vmem:[%s8 + $0x10] sm:$0xf]
        %v805 = vld [vmem:[%s8 + $0x14] sm:$0xf]
        %v806 = vld [vmem:[%s8 + $0x18] sm:$0xf]
        %v807 = vld [vmem:[%s8 + $0x1c] sm:$0xf]
        %v808 = vld [vmem:[%s9] sm:$0x1]
        %v810 = vperm.slane %v808, 0
        %v820 = vunpack.c.l.b16 %v800
        %v821 = vunpack.c.l.b16 %v801
        %v822 = vunpack.c.l.b16 %v802
        %v823 = vunpack.c.l.b16 %v803
        %v824 = vunpack.c.l.b16 %v804
        %v825 = vunpack.c.l.b16 %v805
        %v826 = vunpack.c.l.b16 %v806
        %v827 = vunpack.c.l.b16 %v807
        %v828 = vpack.c.b16 %v821, %v820
        %v829 = vpack.c.b16 %v823, %v822
        %v830 = vpack.c.b16 %v825, %v824
        %v831 = vpack.c.b16 %v827, %v826
        %vm836 = vcmask 523264
        %v838 = vsel %vm836, %v799, 0
        %840 = vmatpush.bf16.msra.mxu0 0
        %841 = vmatpush.bf16.msra.mxu0 0
        %842 = vmatpush.bf16.msra.mxu0 0
        %843 = vmatpush.bf16.msra.mxu0 0
        %844 = vmatpush.bf16.msra.mxu0 %v831
        %845 = vmatpush.bf16.msra.mxu0 %v830
        %846 = vmatpush.bf16.msra.mxu0 %v829
        %847 = vmatpush.bf16.msra.mxu0 %v828
        %848 = vmatmul.bf16.gmra.mxu0 %v838
        %v849 = vpop.f32.mrf.mxu0
        %v850 = vadd.f32 %v810, %v849
        %v851 = vpop.f32.mrf.mxu0
        %852 = vdwg.mxu0
        %v853 = vadd.f32 %v760, %v850
        %854 = vst.msk [vmem:[%s397] sm:$0xff] %vm430, %v853
        %s855 = sand.u32 %s254, 1
        %s856 = scalar_lea.sflag [#allocation4], %s855
        %s857 = sand.u32 %s254, 1
        %s858 = smul.addr %s857, 8
        %s859 = scalar_lea.vmem [#allocation7], %s858
        // Predicated region
        $region69: #{tpu_custom_call.1} parent=59 // pred_check
          %p860 = pneg %p264
        $region70: #{tpu_custom_call.1} parent=59 // pred_check_branch
          %862 = sbr.rel (%p860) target = $region72
        $region71: #{tpu_custom_call.1} parent=59 // pred_region
          %864 = vsyncadd %s856, 0
          %s865 = smul.addr %s26, 8
          %s866 = scalar_lea.hbm %s10, %s865
          %s868 = sshll.u32 %s859, 4
          %s869 = int_to_ptr.vmem [resolvable:$true] %s868
          %s870 = sshll.u32 %s866, 4
          %s871 = int_to_ptr.hbm [resolvable:$true] %s870
          %873 = dma.vmem_to_hbm [thread:$0]  %s869, 128, %s871, %s856
        $region72: #{tpu_custom_call.1} parent=59 // pred_fallthru
          _
      $region60: #{tpu_custom_call.1} parent=5 // pred_fallthru
        _
      %p874 = scmp.le.s32.totalorder 2, %s21
      // Predicated region
      $region73: #{tpu_custom_call.1} parent=5 // pred_check
        %p875 = pneg %p874
      $region74: #{tpu_custom_call.1} parent=5 // pred_check_branch
        %877 = sbr.rel (%p875) target = $region76
      $region75: #{tpu_custom_call.1} parent=5 // pred_region
        %s878 = ssub.s32 %s21, 2
        // Predicated region
        $region77: #{tpu_custom_call.1} parent=75 // pred_check
          %p879 = pneg %p270
        $region78: #{tpu_custom_call.1} parent=75 // pred_check_branch
          %881 = sbr.rel (%p879) target = $region80
        $region79: #{tpu_custom_call.1} parent=75 // pred_region
          %s882 = sand.u32 %s255, 1
          %s883 = scalar_lea.sflag [#allocation4], %s882
          %s884 = sand.u32 %s255, 1
          %s885 = smul.addr %s884, 8
          %s886 = scalar_lea.vmem [#allocation7], %s885
          %888 = dma.done %s883, 128
        $region80: #{tpu_custom_call.1} parent=75 // pred_fallthru
          _
      $region76: #{tpu_custom_call.1} parent=5 // pred_fallthru
        _
    $region6: #{tpu_custom_call.1} parent=1 // loop_footer
      %s25 = sadd.s32 1, %s21
    $region7: #{tpu_custom_call.1} parent=1 // loop_footer_branch
      %20 = sbr.rel target = $region3
    $region8: #{tpu_custom_call.1} parent=1 // loop_exit
      _
    %889 = vsyncpa [#allocation3], 1
    %s890 = scalar_lea.sflag [#allocation3], 1
    %891 = vsyncpa %s890, 1
    %892 = vsyncpa [#allocation6], 1
    %893 = vsyncpa [#allocation4], 1
    %s894 = scalar_lea.sflag [#allocation4], 1
    %895 = vsyncpa %s894, 1

</llo_original>
